<compile_context>
chip_gen: v6e
topology: v6e:2x2x1
jax: 0.10.0
libtpu: 0.0.40
codegen_flags: <defaults>
</compile_context>

<pallas_src>
import functools

import jax
import jax.numpy as jnp
from jax.experimental import pallas as pl
from jax.experimental.pallas import tpu as pltpu


def _sigmoid(z):
    # Explicit form: exp + reciprocal lower cleanly to the EUP/VPU.
    return 1.0 / (1.0 + jnp.exp(-z))


# ----------------------------------------------------------------------------
# LSTM layer kernel
# ----------------------------------------------------------------------------
def lstm_layer_kernel(x_ref, wih_ref, whh_ref, b_ref, seq_ref):
    """One LSTM layer over one batch tile, all T time steps.

    x_ref:   (T, tile_b, F_in)   time-major input tile
    wih_ref: (F_in, 4H)          input->gates weight (transposed vs PyTorch)
    whh_ref: (H, 4H)             hidden->gates weight (transposed vs PyTorch)
    b_ref:   (1, 4H)             b_ih + b_hh
    seq_ref: (T, tile_b, H)      hidden-state sequence output (time-major)
    """
    T, tile_b, f_in = x_ref.shape
    H = whh_ref.shape[0]

    # Hoist the input projection out of the recurrence: one MXU matmul covers
    # all T steps.  (T, tile_b, F_in) -> (T*tile_b, F_in) is layout-trivial
    # because tile_b is a multiple of 8 (sublane aligned).
    xg = jnp.dot(x_ref[...].reshape(T * tile_b, f_in), wih_ref[...],
                 preferred_element_type=jnp.float32)          # (T*tile_b, 4H)

    bias = b_ref[...]                                         # hoisted once
    h = jnp.zeros((tile_b, H), jnp.float32)
    c = jnp.zeros((tile_b, H), jnp.float32)

    # seq_length is tiny (5) and static -> fully unrolled recurrence.
    for t in range(T):
        gates = (xg[t * tile_b:(t + 1) * tile_b, :]
                 + jnp.dot(h, whh_ref[...],
                           preferred_element_type=jnp.float32)
                 + bias)                                      # (tile_b, 4H)
        i_g = _sigmoid(gates[:, 0 * H:1 * H])                 # input gate
        f_g = _sigmoid(gates[:, 1 * H:2 * H])                 # forget gate
        g_g = jnp.tanh(gates[:, 2 * H:3 * H])                 # cell candidate
        o_g = _sigmoid(gates[:, 3 * H:4 * H])                 # output gate
        c = f_g * c + i_g * g_g
        h = o_g * jnp.tanh(c)
        seq_ref[t, :, :] = h.astype(seq_ref.dtype)


def lstm_layer(x_tm, wih, whh, b, *, tile_b=8):
    """x_tm: (T, B, F_in) time-major.  Returns (T, B, H) hidden sequence."""
    T, B, f_in = x_tm.shape
    H = whh.shape[0]
    assert B % tile_b == 0, "pad batch to a multiple of tile_b"
    grid = (B // tile_b,)

    def full2d(shape):
        return pl.BlockSpec(shape, lambda i: (0, 0))

    return pl.pallas_call(
        lstm_layer_kernel,
        out_shape=jax.ShapeDtypeStruct((T, B, H), jnp.float32),
        grid_spec=pltpu.PrefetchScalarGridSpec(
            num_scalar_prefetch=0,
            grid=grid,
            in_specs=[
                pl.BlockSpec((T, tile_b, f_in), lambda i: (0, i, 0)),  # x tile
                full2d((f_in, 4 * H)),                                 # W_ih
                full2d((H, 4 * H)),                                    # W_hh
                full2d((1, 4 * H)),                                    # bias
            ],
            out_specs=pl.BlockSpec((T, tile_b, H), lambda i: (0, i, 0)),
        ),
        compiler_params=pltpu.CompilerParams(
            dimension_semantics=("parallel",)),
    )(x_tm, wih, whh, b)


# ----------------------------------------------------------------------------
# Final fully-connected layer kernel
# ----------------------------------------------------------------------------
def linear_kernel(x_ref, w_ref, b_ref, o_ref):
    o_ref[...] = (jnp.dot(x_ref[...], w_ref[...],
                          preferred_element_type=jnp.float32)
                  + b_ref[...]).astype(o_ref.dtype)


def linear(x, w, b):
    N, K = x.shape
    C = w.shape[1]
    return pl.pallas_call(
        linear_kernel,
        out_shape=jax.ShapeDtypeStruct((N, C), jnp.float32),
        grid_spec=pltpu.PrefetchScalarGridSpec(
            num_scalar_prefetch=0,
            grid=(1,),
            in_specs=[
                pl.BlockSpec((N, K), lambda i: (0, 0)),
                pl.BlockSpec((K, C), lambda i: (0, 0)),
                pl.BlockSpec((1, C), lambda i: (0, 0)),
            ],
            out_specs=pl.BlockSpec((N, C), lambda i: (0, 0)),
        ),
    )(x, w, b)


# ----------------------------------------------------------------------------
# Full module forward
# ----------------------------------------------------------------------------
def lstm_forward(x, params, *, num_layers, hidden_size, tile_b=8):
    """x: (B, T, input_size) batch-first. Returns (num_layers*B, num_classes)."""
    del hidden_size  # implied by the weights
    seq = jnp.transpose(x, (1, 0, 2))            # time-major (T, B, F)
    h_n = []
    for l in range(num_layers):
        seq = lstm_layer(seq, params[f"wih{l}"], params[f"whh{l}"],
                         params[f"b{l}"], tile_b=tile_b)
        h_n.append(seq[-1])                      # final hidden state of layer l
    # Same row ordering as PyTorch's h_n.view(-1, hidden_size): layer-major.
    h_n = jnp.concatenate(h_n, axis=0)           # (num_layers*B, H)
    return linear(h_n, params["wfc"], params["bfc"])


# ----------------------------------------------------------------------------
# Parameters + pure-JAX reference
# ----------------------------------------------------------------------------
def init_params(key, *, input_size, hidden_size, num_layers, num_classes):
    H = hidden_size
    bound = 1.0 / jnp.sqrt(H).astype(jnp.float32)
    ks = iter(jax.random.split(key, 4 * num_layers + 2))
    params = {}
    for l in range(num_layers):
        f_in = input_size if l == 0 else H
        params[f"wih{l}"] = jax.random.uniform(next(ks), (f_in, 4 * H),
                                               jnp.float32, -bound, bound)
        params[f"whh{l}"] = jax.random.uniform(next(ks), (H, 4 * H),
                                               jnp.float32, -bound, bound)
        b_ih = jax.random.uniform(next(ks), (4 * H,), jnp.float32, -bound, bound)
        b_hh = jax.random.uniform(next(ks), (4 * H,), jnp.float32, -bound, bound)
        params[f"b{l}"] = (b_ih + b_hh).reshape(1, 4 * H)
    params["wfc"] = jax.random.uniform(next(ks), (H, num_classes),
                                       jnp.float32, -bound, bound)
    params["bfc"] = jax.random.uniform(next(ks), (1, num_classes),
                                       jnp.float32, -bound, bound)
    return params


def lstm_reference(x, params, *, num_layers, hidden_size):
    H = hidden_size
    B, T, _ = x.shape
    dot = functools.partial(jnp.dot, precision=jax.lax.Precision.HIGHEST,
                            preferred_element_type=jnp.float32)
    seq = x
    h_last = []
    for l in range(num_layers):
        wih, whh, b = params[f"wih{l}"], params[f"whh{l}"], params[f"b{l}"]
        h = jnp.zeros((B, H), jnp.float32)
        c = jnp.zeros((B, H), jnp.float32)
        outs = []
        for t in range(T):
            gates = dot(seq[:, t, :], wih) + dot(h, whh) + b
            i_g = _sigmoid(gates[:, 0 * H:1 * H])
            f_g = _sigmoid(gates[:, 1 * H:2 * H])
            g_g = jnp.tanh(gates[:, 2 * H:3 * H])
            o_g = _sigmoid(gates[:, 3 * H:4 * H])
            c = f_g * c + i_g * g_g
            h = o_g * jnp.tanh(c)
            outs.append(h)
        seq = jnp.stack(outs, axis=1)
        h_last.append(h)
    h_n = jnp.concatenate(h_last, axis=0)
    return dot(h_n, params["wfc"]) + params["bfc"]


if __name__ == "__main__":
    # Small shapes consistent with the module (seq_length = 5 in __init__).
    num_classes, input_size, hidden_size, num_layers = 4, 8, 32, 2
    seq_length, batch = 5, 16        # 16 rows -> 2 grid steps of 8 (2 TCs on v7x)

    key = jax.random.PRNGKey(0)
    k_x, k_p = jax.random.split(key)
    x = jax.random.normal(k_x, (batch, seq_length, input_size), jnp.float32)
    params = init_params(k_p, input_size=input_size, hidden_size=hidden_size,
                         num_layers=num_layers, num_classes=num_classes)

    out = lstm_forward(x, params, num_layers=num_layers,
                       hidden_size=hidden_size, tile_b=8)
    out = jax.block_until_ready(out)
    assert out.shape == (num_layers * batch, num_classes), out.shape

    ref = lstm_reference(x, params, num_layers=num_layers,
                         hidden_size=hidden_size)
    max_err = float(jnp.max(jnp.abs(out - ref)))
    assert jnp.allclose(out, ref, atol=1e-3, rtol=1e-3), f"mismatch: {max_err}"

    print("KERNEL_OK")
</pallas_src>

<mosaic_0001>
module attributes {stable_mosaic.version = 11 : i64} {
  func.func @lstm_layer_kernel(%arg0: i32, %arg1: memref<5x8x8xf32, #tpu.memory_space<vmem>>, %arg2: memref<8x128xf32, #tpu.memory_space<vmem>>, %arg3: memref<32x128xf32, #tpu.memory_space<vmem>>, %arg4: memref<1x128xf32, #tpu.memory_space<vmem>>, %arg5: memref<5x8x32xf32, #tpu.memory_space<vmem>>) attributes {dimension_semantics = [#tpu.dimension_semantics<parallel>], iteration_bounds = array<i64: 2>, scalar_prefetch = 0 : i64, scratch_operands = 0 : i64, tpu.core_type = #tpu.core_type<tc>, window_params = [{transform_indices = @transform_0, window_bounds = array<i64: 5, 8, 8>}, {pipeline_mode = #tpu.pipeline_mode<synchronous>, transform_indices = @transform_1, window_bounds = array<i64: 8, 128>}, {pipeline_mode = #tpu.pipeline_mode<synchronous>, transform_indices = @transform_2, window_bounds = array<i64: 32, 128>}, {pipeline_mode = #tpu.pipeline_mode<synchronous>, transform_indices = @transform_3, window_bounds = array<i64: 1, 128>}, {transform_indices = @transform_4, window_bounds = array<i64: 5, 8, 32>}]} {
    %c0 = arith.constant 0 : index
    %c0_0 = arith.constant 0 : index
    %c0_1 = arith.constant 0 : index
    %0 = vector.load %arg1[%c0, %c0_0, %c0_1] : memref<5x8x8xf32, #tpu.memory_space<vmem>>, vector<5x8x8xf32>
    %1 = vector.shape_cast %0 : vector<5x8x8xf32> to vector<40x8xf32>
    %c0_2 = arith.constant 0 : index
    %c0_3 = arith.constant 0 : index
    %2 = vector.load %arg2[%c0_2, %c0_3] : memref<8x128xf32, #tpu.memory_space<vmem>>, vector<8x128xf32>
    %cst = arith.constant dense<0.000000e+00> : vector<40x128xf32>
    %3 = tpu.matmul %1, %2, %cst {dimension_numbers = #tpu.dot_dimension_numbers<[1], [0], [0], [1], [0, 0, 1, 1], [], []>} : vector<40x8xf32>, vector<8x128xf32>, vector<40x128xf32> -> vector<40x128xf32>
    %c0_4 = arith.constant 0 : index
    %c0_5 = arith.constant 0 : index
    %4 = vector.load %arg4[%c0_4, %c0_5] : memref<1x128xf32, #tpu.memory_space<vmem>>, vector<1x128xf32>
    %cst_6 = arith.constant 0.000000e+00 : f32
    %5 = vector.broadcast %cst_6 : f32 to vector<8x32xf32>
    %cst_7 = arith.constant 0.000000e+00 : f32
    %6 = vector.broadcast %cst_7 : f32 to vector<8x32xf32>
    %7 = vector.extract_strided_slice %3 {offsets = [0, 0], sizes = [8, 128], strides = [1, 1]} : vector<40x128xf32> to vector<8x128xf32>
    %c0_8 = arith.constant 0 : index
    %c0_9 = arith.constant 0 : index
    %8 = vector.load %arg3[%c0_8, %c0_9] : memref<32x128xf32, #tpu.memory_space<vmem>>, vector<32x128xf32>
    %cst_10 = arith.constant dense<0.000000e+00> : vector<8x128xf32>
    %9 = tpu.matmul %5, %8, %cst_10 {dimension_numbers = #tpu.dot_dimension_numbers<[1], [0], [0], [1], [0, 0, 1, 1], [], []>} : vector<8x32xf32>, vector<32x128xf32>, vector<8x128xf32> -> vector<8x128xf32>
    %10 = arith.addf %7, %9 : vector<8x128xf32>
    %11 = vector.broadcast %4 : vector<1x128xf32> to vector<8x128xf32>
    %12 = arith.addf %10, %11 : vector<8x128xf32>
    %13 = vector.extract_strided_slice %12 {offsets = [0, 0], sizes = [8, 32], strides = [1, 1]} : vector<8x128xf32> to vector<8x32xf32>
    %cst_11 = arith.constant 0.000000e+00 : f32
    %14 = vector.broadcast %cst_11 : f32 to vector<8x32xf32>
    %15 = arith.subf %14, %13 : vector<8x32xf32>
    %16 = math.exp %15 : vector<8x32xf32>
    %cst_12 = arith.constant 1.000000e+00 : f32
    %17 = vector.broadcast %cst_12 : f32 to vector<8x32xf32>
    %18 = arith.addf %17, %16 : vector<8x32xf32>
    %cst_13 = arith.constant 1.000000e+00 : f32
    %19 = vector.broadcast %cst_13 : f32 to vector<8x32xf32>
    %20 = arith.divf %19, %18 : vector<8x32xf32>
    %21 = vector.extract_strided_slice %12 {offsets = [0, 32], sizes = [8, 32], strides = [1, 1]} : vector<8x128xf32> to vector<8x32xf32>
    %cst_14 = arith.constant 0.000000e+00 : f32
    %22 = vector.broadcast %cst_14 : f32 to vector<8x32xf32>
    %23 = arith.subf %22, %21 : vector<8x32xf32>
    %24 = math.exp %23 : vector<8x32xf32>
    %cst_15 = arith.constant 1.000000e+00 : f32
    %25 = vector.broadcast %cst_15 : f32 to vector<8x32xf32>
    %26 = arith.addf %25, %24 : vector<8x32xf32>
    %cst_16 = arith.constant 1.000000e+00 : f32
    %27 = vector.broadcast %cst_16 : f32 to vector<8x32xf32>
    %28 = arith.divf %27, %26 : vector<8x32xf32>
    %29 = vector.extract_strided_slice %12 {offsets = [0, 64], sizes = [8, 32], strides = [1, 1]} : vector<8x128xf32> to vector<8x32xf32>
    %30 = math.tanh %29 : vector<8x32xf32>
    %31 = vector.extract_strided_slice %12 {offsets = [0, 96], sizes = [8, 32], strides = [1, 1]} : vector<8x128xf32> to vector<8x32xf32>
    %cst_17 = arith.constant 0.000000e+00 : f32
    %32 = vector.broadcast %cst_17 : f32 to vector<8x32xf32>
    %33 = arith.subf %32, %31 : vector<8x32xf32>
    %34 = math.exp %33 : vector<8x32xf32>
    %cst_18 = arith.constant 1.000000e+00 : f32
    %35 = vector.broadcast %cst_18 : f32 to vector<8x32xf32>
    %36 = arith.addf %35, %34 : vector<8x32xf32>
    %cst_19 = arith.constant 1.000000e+00 : f32
    %37 = vector.broadcast %cst_19 : f32 to vector<8x32xf32>
    %38 = arith.divf %37, %36 : vector<8x32xf32>
    %39 = arith.mulf %28, %6 : vector<8x32xf32>
    %40 = arith.mulf %20, %30 : vector<8x32xf32>
    %41 = arith.addf %39, %40 : vector<8x32xf32>
    %42 = math.tanh %41 : vector<8x32xf32>
    %43 = arith.mulf %38, %42 : vector<8x32xf32>
    %c0_20 = arith.constant 0 : index
    %c0_21 = arith.constant 0 : index
    %c0_22 = arith.constant 0 : index
    %44 = vector.load %arg5[%c0_20, %c0_21, %c0_22] : memref<5x8x32xf32, #tpu.memory_space<vmem>>, vector<1x8x32xf32>
    %45 = vector.shape_cast %44 : vector<1x8x32xf32> to vector<8x32xf32>
    %46 = vector.shape_cast %43 : vector<8x32xf32> to vector<1x8x32xf32>
    tpu.vector_store %arg5[%c0_20, %c0_21, %c0_22], %46 {strides = array<i32>} : memref<5x8x32xf32, #tpu.memory_space<vmem>>, vector<1x8x32xf32>,
    %47 = vector.extract_strided_slice %3 {offsets = [8, 0], sizes = [8, 128], strides = [1, 1]} : vector<40x128xf32> to vector<8x128xf32>
    %c0_23 = arith.constant 0 : index
    %c0_24 = arith.constant 0 : index
    %48 = vector.load %arg3[%c0_23, %c0_24] : memref<32x128xf32, #tpu.memory_space<vmem>>, vector<32x128xf32>
    %cst_25 = arith.constant dense<0.000000e+00> : vector<8x128xf32>
    %49 = tpu.matmul %43, %48, %cst_25 {dimension_numbers = #tpu.dot_dimension_numbers<[1], [0], [0], [1], [0, 0, 1, 1], [], []>} : vector<8x32xf32>, vector<32x128xf32>, vector<8x128xf32> -> vector<8x128xf32>
    %50 = arith.addf %47, %49 : vector<8x128xf32>
    %51 = vector.broadcast %4 : vector<1x128xf32> to vector<8x128xf32>
    %52 = arith.addf %50, %51 : vector<8x128xf32>
    %53 = vector.extract_strided_slice %52 {offsets = [0, 0], sizes = [8, 32], strides = [1, 1]} : vector<8x128xf32> to vector<8x32xf32>
    %cst_26 = arith.constant 0.000000e+00 : f32
    %54 = vector.broadcast %cst_26 : f32 to vector<8x32xf32>
    %55 = arith.subf %54, %53 : vector<8x32xf32>
    %56 = math.exp %55 : vector<8x32xf32>
    %cst_27 = arith.constant 1.000000e+00 : f32
    %57 = vector.broadcast %cst_27 : f32 to vector<8x32xf32>
    %58 = arith.addf %57, %56 : vector<8x32xf32>
    %cst_28 = arith.constant 1.000000e+00 : f32
    %59 = vector.broadcast %cst_28 : f32 to vector<8x32xf32>
    %60 = arith.divf %59, %58 : vector<8x32xf32>
    %61 = vector.extract_strided_slice %52 {offsets = [0, 32], sizes = [8, 32], strides = [1, 1]} : vector<8x128xf32> to vector<8x32xf32>
    %cst_29 = arith.constant 0.000000e+00 : f32
    %62 = vector.broadcast %cst_29 : f32 to vector<8x32xf32>
    %63 = arith.subf %62, %61 : vector<8x32xf32>
    %64 = math.exp %63 : vector<8x32xf32>
    %cst_30 = arith.constant 1.000000e+00 : f32
    %65 = vector.broadcast %cst_30 : f32 to vector<8x32xf32>
    %66 = arith.addf %65, %64 : vector<8x32xf32>
    %cst_31 = arith.constant 1.000000e+00 : f32
    %67 = vector.broadcast %cst_31 : f32 to vector<8x32xf32>
    %68 = arith.divf %67, %66 : vector<8x32xf32>
    %69 = vector.extract_strided_slice %52 {offsets = [0, 64], sizes = [8, 32], strides = [1, 1]} : vector<8x128xf32> to vector<8x32xf32>
    %70 = math.tanh %69 : vector<8x32xf32>
    %71 = vector.extract_strided_slice %52 {offsets = [0, 96], sizes = [8, 32], strides = [1, 1]} : vector<8x128xf32> to vector<8x32xf32>
    %cst_32 = arith.constant 0.000000e+00 : f32
    %72 = vector.broadcast %cst_32 : f32 to vector<8x32xf32>
    %73 = arith.subf %72, %71 : vector<8x32xf32>
    %74 = math.exp %73 : vector<8x32xf32>
    %cst_33 = arith.constant 1.000000e+00 : f32
    %75 = vector.broadcast %cst_33 : f32 to vector<8x32xf32>
    %76 = arith.addf %75, %74 : vector<8x32xf32>
    %cst_34 = arith.constant 1.000000e+00 : f32
    %77 = vector.broadcast %cst_34 : f32 to vector<8x32xf32>
    %78 = arith.divf %77, %76 : vector<8x32xf32>
    %79 = arith.mulf %68, %41 : vector<8x32xf32>
    %80 = arith.mulf %60, %70 : vector<8x32xf32>
    %81 = arith.addf %79, %80 : vector<8x32xf32>
    %82 = math.tanh %81 : vector<8x32xf32>
    %83 = arith.mulf %78, %82 : vector<8x32xf32>
    %c1 = arith.constant 1 : index
    %c0_35 = arith.constant 0 : index
    %c0_36 = arith.constant 0 : index
    %84 = vector.load %arg5[%c1, %c0_35, %c0_36] : memref<5x8x32xf32, #tpu.memory_space<vmem>>, vector<1x8x32xf32>
    %85 = vector.shape_cast %84 : vector<1x8x32xf32> to vector<8x32xf32>
    %86 = vector.shape_cast %83 : vector<8x32xf32> to vector<1x8x32xf32>
    tpu.vector_store %arg5[%c1, %c0_35, %c0_36], %86 {strides = array<i32>} : memref<5x8x32xf32, #tpu.memory_space<vmem>>, vector<1x8x32xf32>,
    %87 = vector.extract_strided_slice %3 {offsets = [16, 0], sizes = [8, 128], strides = [1, 1]} : vector<40x128xf32> to vector<8x128xf32>
    %c0_37 = arith.constant 0 : index
    %c0_38 = arith.constant 0 : index
    %88 = vector.load %arg3[%c0_37, %c0_38] : memref<32x128xf32, #tpu.memory_space<vmem>>, vector<32x128xf32>
    %cst_39 = arith.constant dense<0.000000e+00> : vector<8x128xf32>
    %89 = tpu.matmul %83, %88, %cst_39 {dimension_numbers = #tpu.dot_dimension_numbers<[1], [0], [0], [1], [0, 0, 1, 1], [], []>} : vector<8x32xf32>, vector<32x128xf32>, vector<8x128xf32> -> vector<8x128xf32>
    %90 = arith.addf %87, %89 : vector<8x128xf32>
    %91 = vector.broadcast %4 : vector<1x128xf32> to vector<8x128xf32>
    %92 = arith.addf %90, %91 : vector<8x128xf32>
    %93 = vector.extract_strided_slice %92 {offsets = [0, 0], sizes = [8, 32], strides = [1, 1]} : vector<8x128xf32> to vector<8x32xf32>
    %cst_40 = arith.constant 0.000000e+00 : f32
    %94 = vector.broadcast %cst_40 : f32 to vector<8x32xf32>
    %95 = arith.subf %94, %93 : vector<8x32xf32>
    %96 = math.exp %95 : vector<8x32xf32>
    %cst_41 = arith.constant 1.000000e+00 : f32
    %97 = vector.broadcast %cst_41 : f32 to vector<8x32xf32>
    %98 = arith.addf %97, %96 : vector<8x32xf32>
    %cst_42 = arith.constant 1.000000e+00 : f32
    %99 = vector.broadcast %cst_42 : f32 to vector<8x32xf32>
    %100 = arith.divf %99, %98 : vector<8x32xf32>
    %101 = vector.extract_strided_slice %92 {offsets = [0, 32], sizes = [8, 32], strides = [1, 1]} : vector<8x128xf32> to vector<8x32xf32>
    %cst_43 = arith.constant 0.000000e+00 : f32
    %102 = vector.broadcast %cst_43 : f32 to vector<8x32xf32>
    %103 = arith.subf %102, %101 : vector<8x32xf32>
    %104 = math.exp %103 : vector<8x32xf32>
    %cst_44 = arith.constant 1.000000e+00 : f32
    %105 = vector.broadcast %cst_44 : f32 to vector<8x32xf32>
    %106 = arith.addf %105, %104 : vector<8x32xf32>
    %cst_45 = arith.constant 1.000000e+00 : f32
    %107 = vector.broadcast %cst_45 : f32 to vector<8x32xf32>
    %108 = arith.divf %107, %106 : vector<8x32xf32>
    %109 = vector.extract_strided_slice %92 {offsets = [0, 64], sizes = [8, 32], strides = [1, 1]} : vector<8x128xf32> to vector<8x32xf32>
    %110 = math.tanh %109 : vector<8x32xf32>
    %111 = vector.extract_strided_slice %92 {offsets = [0, 96], sizes = [8, 32], strides = [1, 1]} : vector<8x128xf32> to vector<8x32xf32>
    %cst_46 = arith.constant 0.000000e+00 : f32
    %112 = vector.broadcast %cst_46 : f32 to vector<8x32xf32>
    %113 = arith.subf %112, %111 : vector<8x32xf32>
    %114 = math.exp %113 : vector<8x32xf32>
    %cst_47 = arith.constant 1.000000e+00 : f32
    %115 = vector.broadcast %cst_47 : f32 to vector<8x32xf32>
    %116 = arith.addf %115, %114 : vector<8x32xf32>
    %cst_48 = arith.constant 1.000000e+00 : f32
    %117 = vector.broadcast %cst_48 : f32 to vector<8x32xf32>
    %118 = arith.divf %117, %116 : vector<8x32xf32>
    %119 = arith.mulf %108, %81 : vector<8x32xf32>
    %120 = arith.mulf %100, %110 : vector<8x32xf32>
    %121 = arith.addf %119, %120 : vector<8x32xf32>
    %122 = math.tanh %121 : vector<8x32xf32>
    %123 = arith.mulf %118, %122 : vector<8x32xf32>
    %c2 = arith.constant 2 : index
    %c0_49 = arith.constant 0 : index
    %c0_50 = arith.constant 0 : index
    %124 = vector.load %arg5[%c2, %c0_49, %c0_50] : memref<5x8x32xf32, #tpu.memory_space<vmem>>, vector<1x8x32xf32>
    %125 = vector.shape_cast %124 : vector<1x8x32xf32> to vector<8x32xf32>
    %126 = vector.shape_cast %123 : vector<8x32xf32> to vector<1x8x32xf32>
    tpu.vector_store %arg5[%c2, %c0_49, %c0_50], %126 {strides = array<i32>} : memref<5x8x32xf32, #tpu.memory_space<vmem>>, vector<1x8x32xf32>,
    %127 = vector.extract_strided_slice %3 {offsets = [24, 0], sizes = [8, 128], strides = [1, 1]} : vector<40x128xf32> to vector<8x128xf32>
    %c0_51 = arith.constant 0 : index
    %c0_52 = arith.constant 0 : index
    %128 = vector.load %arg3[%c0_51, %c0_52] : memref<32x128xf32, #tpu.memory_space<vmem>>, vector<32x128xf32>
    %cst_53 = arith.constant dense<0.000000e+00> : vector<8x128xf32>
    %129 = tpu.matmul %123, %128, %cst_53 {dimension_numbers = #tpu.dot_dimension_numbers<[1], [0], [0], [1], [0, 0, 1, 1], [], []>} : vector<8x32xf32>, vector<32x128xf32>, vector<8x128xf32> -> vector<8x128xf32>
    %130 = arith.addf %127, %129 : vector<8x128xf32>
    %131 = vector.broadcast %4 : vector<1x128xf32> to vector<8x128xf32>
    %132 = arith.addf %130, %131 : vector<8x128xf32>
    %133 = vector.extract_strided_slice %132 {offsets = [0, 0], sizes = [8, 32], strides = [1, 1]} : vector<8x128xf32> to vector<8x32xf32>
    %cst_54 = arith.constant 0.000000e+00 : f32
    %134 = vector.broadcast %cst_54 : f32 to vector<8x32xf32>
    %135 = arith.subf %134, %133 : vector<8x32xf32>
    %136 = math.exp %135 : vector<8x32xf32>
    %cst_55 = arith.constant 1.000000e+00 : f32
    %137 = vector.broadcast %cst_55 : f32 to vector<8x32xf32>
    %138 = arith.addf %137, %136 : vector<8x32xf32>
    %cst_56 = arith.constant 1.000000e+00 : f32
    %139 = vector.broadcast %cst_56 : f32 to vector<8x32xf32>
    %140 = arith.divf %139, %138 : vector<8x32xf32>
    %141 = vector.extract_strided_slice %132 {offsets = [0, 32], sizes = [8, 32], strides = [1, 1]} : vector<8x128xf32> to vector<8x32xf32>
    %cst_57 = arith.constant 0.000000e+00 : f32
    %142 = vector.broadcast %cst_57 : f32 to vector<8x32xf32>
    %143 = arith.subf %142, %141 : vector<8x32xf32>
    %144 = math.exp %143 : vector<8x32xf32>
    %cst_58 = arith.constant 1.000000e+00 : f32
    %145 = vector.broadcast %cst_58 : f32 to vector<8x32xf32>
    %146 = arith.addf %145, %144 : vector<8x32xf32>
    %cst_59 = arith.constant 1.000000e+00 : f32
    %147 = vector.broadcast %cst_59 : f32 to vector<8x32xf32>
    %148 = arith.divf %147, %146 : vector<8x32xf32>
    %149 = vector.extract_strided_slice %132 {offsets = [0, 64], sizes = [8, 32], strides = [1, 1]} : vector<8x128xf32> to vector<8x32xf32>
    %150 = math.tanh %149 : vector<8x32xf32>
    %151 = vector.extract_strided_slice %132 {offsets = [0, 96], sizes = [8, 32], strides = [1, 1]} : vector<8x128xf32> to vector<8x32xf32>
    %cst_60 = arith.constant 0.000000e+00 : f32
    %152 = vector.broadcast %cst_60 : f32 to vector<8x32xf32>
    %153 = arith.subf %152, %151 : vector<8x32xf32>
    %154 = math.exp %153 : vector<8x32xf32>
    %cst_61 = arith.constant 1.000000e+00 : f32
    %155 = vector.broadcast %cst_61 : f32 to vector<8x32xf32>
    %156 = arith.addf %155, %154 : vector<8x32xf32>
    %cst_62 = arith.constant 1.000000e+00 : f32
    %157 = vector.broadcast %cst_62 : f32 to vector<8x32xf32>
    %158 = arith.divf %157, %156 : vector<8x32xf32>
    %159 = arith.mulf %148, %121 : vector<8x32xf32>
    %160 = arith.mulf %140, %150 : vector<8x32xf32>
    %161 = arith.addf %159, %160 : vector<8x32xf32>
    %162 = math.tanh %161 : vector<8x32xf32>
    %163 = arith.mulf %158, %162 : vector<8x32xf32>
    %c3 = arith.constant 3 : index
    %c0_63 = arith.constant 0 : index
    %c0_64 = arith.constant 0 : index
    %164 = vector.load %arg5[%c3, %c0_63, %c0_64] : memref<5x8x32xf32, #tpu.memory_space<vmem>>, vector<1x8x32xf32>
    %165 = vector.shape_cast %164 : vector<1x8x32xf32> to vector<8x32xf32>
    %166 = vector.shape_cast %163 : vector<8x32xf32> to vector<1x8x32xf32>
    tpu.vector_store %arg5[%c3, %c0_63, %c0_64], %166 {strides = array<i32>} : memref<5x8x32xf32, #tpu.memory_space<vmem>>, vector<1x8x32xf32>,
    %167 = vector.extract_strided_slice %3 {offsets = [32, 0], sizes = [8, 128], strides = [1, 1]} : vector<40x128xf32> to vector<8x128xf32>
    %c0_65 = arith.constant 0 : index
    %c0_66 = arith.constant 0 : index
    %168 = vector.load %arg3[%c0_65, %c0_66] : memref<32x128xf32, #tpu.memory_space<vmem>>, vector<32x128xf32>
    %cst_67 = arith.constant dense<0.000000e+00> : vector<8x128xf32>
    %169 = tpu.matmul %163, %168, %cst_67 {dimension_numbers = #tpu.dot_dimension_numbers<[1], [0], [0], [1], [0, 0, 1, 1], [], []>} : vector<8x32xf32>, vector<32x128xf32>, vector<8x128xf32> -> vector<8x128xf32>
    %170 = arith.addf %167, %169 : vector<8x128xf32>
    %171 = vector.broadcast %4 : vector<1x128xf32> to vector<8x128xf32>
    %172 = arith.addf %170, %171 : vector<8x128xf32>
    %173 = vector.extract_strided_slice %172 {offsets = [0, 0], sizes = [8, 32], strides = [1, 1]} : vector<8x128xf32> to vector<8x32xf32>
    %cst_68 = arith.constant 0.000000e+00 : f32
    %174 = vector.broadcast %cst_68 : f32 to vector<8x32xf32>
    %175 = arith.subf %174, %173 : vector<8x32xf32>
    %176 = math.exp %175 : vector<8x32xf32>
    %cst_69 = arith.constant 1.000000e+00 : f32
    %177 = vector.broadcast %cst_69 : f32 to vector<8x32xf32>
    %178 = arith.addf %177, %176 : vector<8x32xf32>
    %cst_70 = arith.constant 1.000000e+00 : f32
    %179 = vector.broadcast %cst_70 : f32 to vector<8x32xf32>
    %180 = arith.divf %179, %178 : vector<8x32xf32>
    %181 = vector.extract_strided_slice %172 {offsets = [0, 32], sizes = [8, 32], strides = [1, 1]} : vector<8x128xf32> to vector<8x32xf32>
    %cst_71 = arith.constant 0.000000e+00 : f32
    %182 = vector.broadcast %cst_71 : f32 to vector<8x32xf32>
    %183 = arith.subf %182, %181 : vector<8x32xf32>
    %184 = math.exp %183 : vector<8x32xf32>
    %cst_72 = arith.constant 1.000000e+00 : f32
    %185 = vector.broadcast %cst_72 : f32 to vector<8x32xf32>
    %186 = arith.addf %185, %184 : vector<8x32xf32>
    %cst_73 = arith.constant 1.000000e+00 : f32
    %187 = vector.broadcast %cst_73 : f32 to vector<8x32xf32>
    %188 = arith.divf %187, %186 : vector<8x32xf32>
    %189 = vector.extract_strided_slice %172 {offsets = [0, 64], sizes = [8, 32], strides = [1, 1]} : vector<8x128xf32> to vector<8x32xf32>
    %190 = math.tanh %189 : vector<8x32xf32>
    %191 = vector.extract_strided_slice %172 {offsets = [0, 96], sizes = [8, 32], strides = [1, 1]} : vector<8x128xf32> to vector<8x32xf32>
    %cst_74 = arith.constant 0.000000e+00 : f32
    %192 = vector.broadcast %cst_74 : f32 to vector<8x32xf32>
    %193 = arith.subf %192, %191 : vector<8x32xf32>
    %194 = math.exp %193 : vector<8x32xf32>
    %cst_75 = arith.constant 1.000000e+00 : f32
    %195 = vector.broadcast %cst_75 : f32 to vector<8x32xf32>
    %196 = arith.addf %195, %194 : vector<8x32xf32>
    %cst_76 = arith.constant 1.000000e+00 : f32
    %197 = vector.broadcast %cst_76 : f32 to vector<8x32xf32>
    %198 = arith.divf %197, %196 : vector<8x32xf32>
    %199 = arith.mulf %188, %161 : vector<8x32xf32>
    %200 = arith.mulf %180, %190 : vector<8x32xf32>
    %201 = arith.addf %199, %200 : vector<8x32xf32>
    %202 = math.tanh %201 : vector<8x32xf32>
    %203 = arith.mulf %198, %202 : vector<8x32xf32>
    %c4 = arith.constant 4 : index
    %c0_77 = arith.constant 0 : index
    %c0_78 = arith.constant 0 : index
    %204 = vector.load %arg5[%c4, %c0_77, %c0_78] : memref<5x8x32xf32, #tpu.memory_space<vmem>>, vector<1x8x32xf32>
    %205 = vector.shape_cast %204 : vector<1x8x32xf32> to vector<8x32xf32>
    %206 = vector.shape_cast %203 : vector<8x32xf32> to vector<1x8x32xf32>
    tpu.vector_store %arg5[%c4, %c0_77, %c0_78], %206 {strides = array<i32>} : memref<5x8x32xf32, #tpu.memory_space<vmem>>, vector<1x8x32xf32>,
    return
  }
  func.func @transform_0(%arg0: i32) -> (i32, i32, i32) {
    %c0_i32 = arith.constant 0 : i32
    %c0_i32_0 = arith.constant 0 : i32
    %c0_i32_1 = arith.constant 0 : i32
    return %c0_i32, %arg0, %c0_i32_0 : i32, i32, i32
  }
  func.func @transform_1(%arg0: i32) -> (i32, i32) {
    %c0_i32 = arith.constant 0 : i32
    %c0_i32_0 = arith.constant 0 : i32
    %c0_i32_1 = arith.constant 0 : i32
    return %c0_i32, %c0_i32_0 : i32, i32
  }
  func.func @transform_2(%arg0: i32) -> (i32, i32) {
    %c0_i32 = arith.constant 0 : i32
    %c0_i32_0 = arith.constant 0 : i32
    %c0_i32_1 = arith.constant 0 : i32
    return %c0_i32, %c0_i32_0 : i32, i32
  }
  func.func @transform_3(%arg0: i32) -> (i32, i32) {
    %c0_i32 = arith.constant 0 : i32
    %c0_i32_0 = arith.constant 0 : i32
    %c0_i32_1 = arith.constant 0 : i32
    return %c0_i32, %c0_i32_0 : i32, i32
  }
  func.func @transform_4(%arg0: i32) -> (i32, i32, i32) {
    %c0_i32 = arith.constant 0 : i32
    %c0_i32_0 = arith.constant 0 : i32
    %c0_i32_1 = arith.constant 0 : i32
    return %c0_i32, %arg0, %c0_i32_0 : i32, i32, i32
  }
}

</mosaic_0001>

<llo_original>
// kernel: tpu_custom_call.1
$region0: #{tpu_custom_call.1}
  #allocation0 [shape = 'u32[]', space=smem, size = 0x4, offset = 0x4, fixed_abs, tag = 'smem constant byte address 0x4 - core index']
  #allocation1 [shape = 'u32[144,128]{1,0:T(1,128)}', space=vmem, size = 0x12000, scoped, tag = 'internal scratch']
  %s0 = inlined_call_operand.vmem [shape: f32[5,16,8], index: 0, kind: input, shape index: {}]
  %s1 = inlined_call_operand.vmem [shape: f32[8,128], index: 1, kind: input, shape index: {}]
  %s2 = inlined_call_operand.vmem [shape: f32[32,128], index: 2, kind: input, shape index: {}]
  %s3 = inlined_call_operand.vmem [shape: f32[1,128], index: 3, kind: input, shape index: {}]
  %s4 = inlined_call_operand.hbm [shape: f32[5,16,32], index: 4, kind: output, shape index: {}]
  %s5 = sld [smem:[#allocation0]]
  $region87: #{tpu_custom_call.1} parent=0
    _
  %s7 = ssub.s32 1, %s5
  %s8 = scalar_select 0, %s7, %s5
  $region1: #{tpu_custom_call.1} parent=0
    #allocation2 [shape = 'u8[40960]{0}', space=vmem, size = 0xa000, scoped, tag = 'input window, operand 0']
    #allocation3 [shape = 'u8[40960]{0}', space=vmem, size = 0xa000, scoped, tag = 'output window, operand 0']
    #allocation4 [shape = 's32[2]{0}', space=sflag, size = 0x8, scoped, tag = 'scoped memory for tpu_custom_call.1']
    %9 = vsyncpa [#allocation4], 0
    %s10 = scalar_lea.sflag [#allocation4], 1
    %11 = vsyncpa %s10, 0
    loop: start=0, step=1, limit=4
    $region2: #{tpu_custom_call.1} parent=1 // loop_pre_header
      _
    $region3: #{tpu_custom_call.1} parent=1 // loop_header
      %s13 = sphi 0, %s17
      %p14 = scmp.ge.s32.totalorder %s13, 4
      %s23 = sphi 0, %s25
      %s26 = sphi 0, %s23
      %s27 = sphi 0, %s26
      %s43 = sphi 0, %s27
      %s47 = sphi 0, %s47
      %s49 = sphi 0, %s47
      %s50 = sphi 0, %s49
      %s64 = sphi 0, %s50
      %s68 = sphi 0, %s68
      %s70 = sphi 0, %s68
      %s71 = sphi 0, %s70
      %s85 = sphi 0, %s71
      %s89 = sphi 0, %s89
      %s91 = sphi 0, %s89
      %s92 = sphi 0, %s91
      %s106 = sphi 0, %s92
      %s112 = sphi 0, %s114
      %s115 = sphi 0, %s112
      %s116 = sphi 0, %s115
      %s132 = sphi 0, %s116
    $region4: #{tpu_custom_call.1} parent=1 // loop_header_branch
      %16 = sbr.rel (%p14) target = $region8
    $region5: #{tpu_custom_call.1} parent=1 // loop_body
      %s18 = ssub.s32 %s13, 1
      %s19 = ssub.s32 %s13, 2
      %s20 = sadd.s32 %s13, 1
      %s21 = ssub.s32 %s13, %s20
      %p22 = scmp.eq.s32.totalorder %s21, 0
      %s24 = sadd.s32 %s23, 1
      %s25 = scalar_select %p22, %s23, %s24
      %p28 = pneg %p22
      %p29 = scmp.eq.s32.totalorder %s13, 1
      %p30 = por %p28, %p29
      %p31 = scmp.ne.s32.totalorder %s23, %s26
      %p32 = scmp.eq.s32.totalorder %s13, 0
      %p33 = por %p31, %p32
      %p34 = scmp.ne.s32.totalorder %s23, %s26
      %p35 = scmp.eq.s32.totalorder %s18, 1
      %p36 = por %p34, %p35
      %p37 = scmp.ne.s32.totalorder %s26, %s27
      %p38 = scmp.eq.s32.totalorder %s18, 0
      %p39 = por %p37, %p38
      %p40 = scmp.ne.s32.totalorder %s26, %s27
      %p41 = scmp.eq.s32.totalorder %s19, 1
      %p42 = por %p40, %p41
      %p44 = scmp.ne.s32.totalorder %s27, %s43
      %p45 = scmp.eq.s32.totalorder %s19, 0
      %p46 = por %p44, %p45
      %s48 = sadd.s32 %s47, 1
      %p51 = scmp.eq.s32.totalorder %s13, 1
      %p52 = scmp.ne.s32.totalorder %s47, %s49
      %p53 = scmp.eq.s32.totalorder %s13, 0
      %p54 = por %p52, %p53
      %p55 = scmp.ne.s32.totalorder %s47, %s49
      %p56 = scmp.eq.s32.totalorder %s18, 1
      %p57 = por %p55, %p56
      %p58 = scmp.ne.s32.totalorder %s49, %s50
      %p59 = scmp.eq.s32.totalorder %s18, 0
      %p60 = por %p58, %p59
      %p61 = scmp.ne.s32.totalorder %s49, %s50
      %p62 = scmp.eq.s32.totalorder %s19, 1
      %p63 = por %p61, %p62
      %p65 = scmp.ne.s32.totalorder %s50, %s64
      %p66 = scmp.eq.s32.totalorder %s19, 0
      %p67 = por %p65, %p66
      %s69 = sadd.s32 %s68, 1
      %p72 = scmp.eq.s32.totalorder %s13, 1
      %p73 = scmp.ne.s32.totalorder %s68, %s70
      %p74 = scmp.eq.s32.totalorder %s13, 0
      %p75 = por %p73, %p74
      %p76 = scmp.ne.s32.totalorder %s68, %s70
      %p77 = scmp.eq.s32.totalorder %s18, 1
      %p78 = por %p76, %p77
      %p79 = scmp.ne.s32.totalorder %s70, %s71
      %p80 = scmp.eq.s32.totalorder %s18, 0
      %p81 = por %p79, %p80
      %p82 = scmp.ne.s32.totalorder %s70, %s71
      %p83 = scmp.eq.s32.totalorder %s19, 1
      %p84 = por %p82, %p83
      %p86 = scmp.ne.s32.totalorder %s71, %s85
      %p87 = scmp.eq.s32.totalorder %s19, 0
      %p88 = por %p86, %p87
      %s90 = sadd.s32 %s89, 1
      %p93 = scmp.eq.s32.totalorder %s13, 1
      %p94 = scmp.ne.s32.totalorder %s89, %s91
      %p95 = scmp.eq.s32.totalorder %s13, 0
      %p96 = por %p94, %p95
      %p97 = scmp.ne.s32.totalorder %s89, %s91
      %p98 = scmp.eq.s32.totalorder %s18, 1
      %p99 = por %p97, %p98
      %p100 = scmp.ne.s32.totalorder %s91, %s92
      %p101 = scmp.eq.s32.totalorder %s18, 0
      %p102 = por %p100, %p101
      %p103 = scmp.ne.s32.totalorder %s91, %s92
      %p104 = scmp.eq.s32.totalorder %s19, 1
      %p105 = por %p103, %p104
      %p107 = scmp.ne.s32.totalorder %s92, %s106
      %p108 = scmp.eq.s32.totalorder %s19, 0
      %p109 = por %p107, %p108
      %s110 = ssub.s32 %s13, %s20
      %p111 = scmp.eq.s32.totalorder %s110, 0
      %s113 = sadd.s32 %s112, 1
      %s114 = scalar_select %p111, %s112, %s113
      %p117 = pneg %p111
      %p118 = scmp.eq.s32.totalorder %s13, 1
      %p119 = por %p117, %p118
      %p120 = scmp.ne.s32.totalorder %s112, %s115
      %p121 = scmp.eq.s32.totalorder %s13, 0
      %p122 = por %p120, %p121
      %p123 = scmp.ne.s32.totalorder %s112, %s115
      %p124 = scmp.eq.s32.totalorder %s18, 1
      %p125 = por %p123, %p124
      %p126 = scmp.ne.s32.totalorder %s115, %s116
      %p127 = scmp.eq.s32.totalorder %s18, 0
      %p128 = por %p126, %p127
      %p129 = scmp.ne.s32.totalorder %s115, %s116
      %p130 = scmp.eq.s32.totalorder %s19, 1
      %p131 = por %p129, %p130
      %p133 = scmp.ne.s32.totalorder %s116, %s132
      %p134 = scmp.eq.s32.totalorder %s19, 0
      %p135 = por %p133, %p134
      %p136 = scmp.le.s32.totalorder 1, %s13
      %p137 = scmp.lt.s32.totalorder %s13, 3
      %p138 = pnand %p136, %p137
      %p139 = pneg %p138
      // Predicated region
      $region9: #{tpu_custom_call.1} parent=5 // pred_check
        _
      $region10: #{tpu_custom_call.1} parent=5 // pred_check_branch
        %141 = sbr.rel (%p138) target = $region12
      $region11: #{tpu_custom_call.1} parent=5 // pred_region
        %s142 = ssub.s32 %s13, 1
        // Predicated region
        $region13: #{tpu_custom_call.1} parent=11 // pred_check
          %p143 = pneg %p60
        $region14: #{tpu_custom_call.1} parent=11 // pred_check_branch
          %145 = sbr.rel (%p143) target = $region16
        $region15: #{tpu_custom_call.1} parent=11 // pred_region
          _
        $region16: #{tpu_custom_call.1} parent=11 // pred_fallthru
          _
        // Predicated region
        $region17: #{tpu_custom_call.1} parent=11 // pred_check
          %p146 = pneg %p81
        $region18: #{tpu_custom_call.1} parent=11 // pred_check_branch
          %148 = sbr.rel (%p146) target = $region20
        $region19: #{tpu_custom_call.1} parent=11 // pred_region
          _
        $region20: #{tpu_custom_call.1} parent=11 // pred_fallthru
          _
        // Predicated region
        $region21: #{tpu_custom_call.1} parent=11 // pred_check
          %p149 = pneg %p102
        $region22: #{tpu_custom_call.1} parent=11 // pred_check_branch
          %151 = sbr.rel (%p149) target = $region24
        $region23: #{tpu_custom_call.1} parent=11 // pred_region
          _
        $region24: #{tpu_custom_call.1} parent=11 // pred_fallthru
          _
      $region12: #{tpu_custom_call.1} parent=5 // pred_fallthru
        _
      %p152 = scmp.lt.s32.totalorder %s13, 2
      // Predicated region
      $region25: #{tpu_custom_call.1} parent=5 // pred_check
        %p153 = pneg %p152
      $region26: #{tpu_custom_call.1} parent=5 // pred_check_branch
        %155 = sbr.rel (%p153) target = $region28
      $region27: #{tpu_custom_call.1} parent=5 // pred_region
        // Predicated region
        $region29: #{tpu_custom_call.1} parent=27 // pred_check
          %p156 = pneg %p33
        $region30: #{tpu_custom_call.1} parent=27 // pred_check_branch
          %158 = sbr.rel (%p156) target = $region32
        $region31: #{tpu_custom_call.1} parent=27 // pred_region
          %s159 = sand.u32 %s23, 1
          %s160 = sand.u32 %s23, 1
          %s161 = smul.addr %s160, 40
          %s162 = scalar_lea.vmem [#allocation2], %s161
          %s163 = smul.addr %s13, 8
          %s164 = scalar_lea.vmem %s0, %s163
          // Predicated region
          $region33: #{tpu_custom_call.1} parent=31 // pred_check
            _
          $region34: #{tpu_custom_call.1} parent=31 // pred_check_branch
            %166 = sbr.rel (0) target = $region36
          $region35: #{tpu_custom_call.1} parent=31 // pred_region
            // Predicated region
            $region37: #{tpu_custom_call.1} parent=35 // pred_check
              _
            $region38: #{tpu_custom_call.1} parent=35 // pred_check_branch
              %168 = sbr.rel (0) target = $region40
            $region39: #{tpu_custom_call.1} parent=35 // pred_region
              // Predicated region
              $region52: #{tpu_custom_call.1} parent=39 // pred_check
                _
              $region53: #{tpu_custom_call.1} parent=39 // pred_check_branch
                %192 = sbr.rel (0) target = $region55
              $region54: #{tpu_custom_call.1} parent=39 // pred_region
                loop: start=0, step=1, limit=1
                $region56: #{tpu_custom_call.1} parent=54 // loop_pre_header
                  _
                $region57: #{tpu_custom_call.1} parent=54 // loop_header
                  %s194 = sphi 0, %s198
                  %p195 = scmp.ge.s32.totalorder %s194, 1
                  %s199 = sphi %s164, %s164
                  %s200 = sphi %s162, %s162
                $region58: #{tpu_custom_call.1} parent=54 // loop_header_branch
                  %197 = sbr.rel (%p195) target = $region62
                $region59: #{tpu_custom_call.1} parent=54 // loop_body
                  %v201 = vld [vmem:[%s199] sm:$0xff]
                  %202 = vst [vmem:[%s200] sm:$0xff] %v201
                  %v203 = vld [vmem:[%s199 + $0x10] sm:$0xff]
                  %204 = vst [vmem:[%s200 + $0x8] sm:$0xff] %v203
                  %v205 = vld [vmem:[%s199 + $0x20] sm:$0xff]
                  %206 = vst [vmem:[%s200 + $0x10] sm:$0xff] %v205
                  %v207 = vld [vmem:[%s199 + $0x30] sm:$0xff]
                  %208 = vst [vmem:[%s200 + $0x18] sm:$0xff] %v207
                  %v209 = vld [vmem:[%s199 + $0x40] sm:$0xff]
                  %210 = vst [vmem:[%s200 + $0x20] sm:$0xff] %v209
                $region60: #{tpu_custom_call.1} parent=54 // loop_footer
                  %s198 = sadd.s32 1, %s194
                $region61: #{tpu_custom_call.1} parent=54 // loop_footer_branch
                  %193 = sbr.rel target = $region57
                $region62: #{tpu_custom_call.1} parent=54 // loop_exit
                  _
              $region55: #{tpu_custom_call.1} parent=39 // pred_fallthru
                _
              // Predicated region
              $region63: #{tpu_custom_call.1} parent=39 // pred_check
                _
              $region64: #{tpu_custom_call.1} parent=39 // pred_check_branch
                %212 = sbr.rel target = $region66
              $region65: #{tpu_custom_call.1} parent=39 // pred_region
                _
              $region66: #{tpu_custom_call.1} parent=39 // pred_fallthru
                _
            $region40: #{tpu_custom_call.1} parent=35 // pred_fallthru
              _
            // Predicated region
            $region41: #{tpu_custom_call.1} parent=35 // pred_check
              _
            $region42: #{tpu_custom_call.1} parent=35 // pred_check_branch
              %170 = sbr.rel target = $region44
            $region43: #{tpu_custom_call.1} parent=35 // pred_region
              %s172 = ssub.s32 256, 1
              loop: start=0, step=1, limit=1
              $region45: #{tpu_custom_call.1} parent=43 // loop_pre_header
                _
              $region46: #{tpu_custom_call.1} parent=43 // loop_header
                %s174 = sphi 0, %s178
                %p175 = scmp.ge.s32.totalorder %s174, 1
                %s179 = sphi %s164, %s164
                %s180 = sphi %s162, %s162
              $region47: #{tpu_custom_call.1} parent=43 // loop_header_branch
                %177 = sbr.rel (%p175) target = $region51
              $region48: #{tpu_custom_call.1} parent=43 // loop_body
                %v181 = vld [vmem:[%s179] sm:%s172]
                %182 = vst [vmem:[%s180] sm:%s172] %v181
                %v183 = vld [vmem:[%s179 + $0x10] sm:%s172]
                %184 = vst [vmem:[%s180 + $0x8] sm:%s172] %v183
                %v185 = vld [vmem:[%s179 + $0x20] sm:%s172]
                %186 = vst [vmem:[%s180 + $0x10] sm:%s172] %v185
                %v187 = vld [vmem:[%s179 + $0x30] sm:%s172]
                %188 = vst [vmem:[%s180 + $0x18] sm:%s172] %v187
                %v189 = vld [vmem:[%s179 + $0x40] sm:%s172]
                %190 = vst [vmem:[%s180 + $0x20] sm:%s172] %v189
              $region49: #{tpu_custom_call.1} parent=43 // loop_footer
                %s178 = sadd.s32 1, %s174
              $region50: #{tpu_custom_call.1} parent=43 // loop_footer_branch
                %173 = sbr.rel target = $region46
              $region51: #{tpu_custom_call.1} parent=43 // loop_exit
                _
            $region44: #{tpu_custom_call.1} parent=35 // pred_fallthru
              _
          $region36: #{tpu_custom_call.1} parent=31 // pred_fallthru
            _
          %213 = vnop
        $region32: #{tpu_custom_call.1} parent=27 // pred_fallthru
          _
      $region28: #{tpu_custom_call.1} parent=5 // pred_fallthru
        _
      %p214 = scmp.le.s32.totalorder 1, %s13
      %p215 = scmp.lt.s32.totalorder %s13, 3
      %p216 = pnand %p214, %p215
      %p217 = pneg %p216
      // Predicated region
      $region67: #{tpu_custom_call.1} parent=5 // pred_check
        _
      $region68: #{tpu_custom_call.1} parent=5 // pred_check_branch
        %219 = sbr.rel (%p216) target = $region70
      $region69: #{tpu_custom_call.1} parent=5 // pred_region
        %s220 = ssub.s32 %s13, 1
        %s221 = sand.u32 %s26, 1
        %s222 = sand.u32 %s26, 1
        %s223 = smul.addr %s222, 40
        %s224 = scalar_lea.vmem [#allocation2], %s223
        // Predicated region
        $region71: #{tpu_custom_call.1} parent=69 // pred_check
          %p225 = pneg %p39
        $region72: #{tpu_custom_call.1} parent=69 // pred_check_branch
          %227 = sbr.rel (%p225) target = $region74
        $region73: #{tpu_custom_call.1} parent=69 // pred_region
          _
        $region74: #{tpu_custom_call.1} parent=69 // pred_fallthru
          _
        %s228 = sand.u32 %s26, 1
        %s229 = sand.u32 %s26, 1
        %s230 = smul.addr %s229, 40
        %s231 = scalar_lea.vmem [#allocation2], %s230
        %p232 = pneg %p39
        %p233 = pneg %p36
        %p234 = pneg %p60
        %p235 = pneg %p57
        %p236 = pneg %p81
        %p237 = pneg %p78
        %p238 = pneg %p102
        %p239 = pneg %p99
        %p240 = pneg %p128
        %p241 = pneg %p125
        %s242 = sand.u32 %s115, 1
        %s243 = scalar_lea.sflag [#allocation4], %s242
        %s244 = sand.u32 %s115, 1
        %s245 = smul.addr %s244, 40
        %s246 = scalar_lea.vmem [#allocation3], %s245
        %v247 = vld [vmem:[%s224] sm:$0xff]
        %v248 = vld [vmem:[%s224 + $0x8] sm:$0xff]
        %v249 = vld [vmem:[%s224 + $0x10] sm:$0xff]
        %v250 = vld [vmem:[%s224 + $0x18] sm:$0xff]
        %v251 = vld [vmem:[%s224 + $0x20] sm:$0xff]
        %v252 = vld [vmem:[%s1] sm:$0xff]
        %vm253 = vcmask 64512
        %v255 = vsel %vm253, %v247, 0
        %v258 = vsel %vm253, %v248, 0
        %v261 = vsel %vm253, %v249, 0
        %v264 = vsel %vm253, %v250, 0
        %v267 = vsel %vm253, %v251, 0
        %269 = vmatprep.subr.mxu0 0.0
        %270 = vmatpush1.msra.mxu0 0.0
        %271 = vmatprep.subr.mxu0 0.0
        %272 = vmatpush1.msra.mxu0 0.0
        %273 = vmatprep.subr.mxu0 0.0
        %274 = vmatpush1.msra.mxu0 0.0
        %275 = vmatprep.subr.mxu0 0.0
        %276 = vmatpush1.msra.mxu0 0.0
        %277 = vmatprep.subr.mxu0 0.0
        %278 = vmatpush1.msra.mxu0 0.0
        %279 = vmatprep.subr.mxu0 0.0
        %280 = vmatpush1.msra.mxu0 0.0
        %281 = vmatprep.subr.mxu0 0.0
        %282 = vmatpush1.msra.mxu0 0.0
        %283 = vmatprep.subr.mxu0 0.0
        %284 = vmatpush1.msra.mxu0 0.0
        %285 = vmatprep.subr.mxu0 0.0
        %286 = vmatpush1.msra.mxu0 0.0
        %287 = vmatprep.subr.mxu0 0.0
        %288 = vmatpush1.msra.mxu0 0.0
        %289 = vmatprep.subr.mxu0 0.0
        %290 = vmatpush1.msra.mxu0 0.0
        %291 = vmatprep.subr.mxu0 0.0
        %292 = vmatpush1.msra.mxu0 0.0
        %293 = vmatprep.subr.mxu0 0.0
        %294 = vmatpush1.msra.mxu0 0.0
        %295 = vmatprep.subr.mxu0 0.0
        %296 = vmatpush1.msra.mxu0 0.0
        %297 = vmatprep.subr.mxu0 0.0
        %298 = vmatpush1.msra.mxu0 0.0
        %299 = vmatprep.subr.mxu0 0.0
        %300 = vmatpush1.msra.mxu0 %v252
        %301 = vmatprep.subr.mxu0 0.0
        %302 = vmatpush2.msra.mxu0 0.0
        %303 = vmatprep.subr.mxu0 0.0
        %304 = vmatpush2.msra.mxu0 0.0
        %305 = vmatprep.subr.mxu0 0.0
        %306 = vmatpush2.msra.mxu0 0.0
        %307 = vmatprep.subr.mxu0 0.0
        %308 = vmatpush2.msra.mxu0 0.0
        %309 = vmatprep.subr.mxu0 0.0
        %310 = vmatpush2.msra.mxu0 0.0
        %311 = vmatprep.subr.mxu0 0.0
        %312 = vmatpush2.msra.mxu0 0.0
        %313 = vmatprep.subr.mxu0 0.0
        %314 = vmatpush2.msra.mxu0 0.0
        %315 = vmatprep.subr.mxu0 0.0
        %316 = vmatpush2.msra.mxu0 0.0
        %317 = vmatprep.subr.mxu0 0.0
        %318 = vmatpush2.msra.mxu0 0.0
        %319 = vmatprep.subr.mxu0 0.0
        %320 = vmatpush2.msra.mxu0 0.0
        %321 = vmatprep.subr.mxu0 0.0
        %322 = vmatpush2.msra.mxu0 0.0
        %323 = vmatprep.subr.mxu0 0.0
        %324 = vmatpush2.msra.mxu0 0.0
        %325 = vmatprep.subr.mxu0 0.0
        %326 = vmatpush2.msra.mxu0 0.0
        %327 = vmatprep.subr.mxu0 0.0
        %328 = vmatpush2.msra.mxu0 0.0
        %329 = vmatprep.subr.mxu0 0.0
        %330 = vmatpush2.msra.mxu0 0.0
        %331 = vmatprep.subr.mxu0 0.0
        %332 = vmatpush2.msra.mxu0 0.0
        %333 = vmatprep.mubr.f32.mxu0 0.0
        %334 = vmatmul.mubr.f32.gmra.mxu0 %v255
        %v335 = vpop.f32.mrf.mxu0
        %v336 = vadd.f32 0.0, %v335
        %v337 = vpop.f32.mrf.mxu0
        %338 = vmatprep.mubr.f32.mxu0 0.0
        %339 = vmatmul.mubr.f32.gmra.mxu0 %v258
        %v340 = vpop.f32.mrf.mxu0
        %v341 = vadd.f32 0.0, %v340
        %v342 = vpop.f32.mrf.mxu0
        %343 = vmatprep.mubr.f32.mxu0 0.0
        %344 = vmatmul.mubr.f32.gmra.mxu0 %v261
        %v345 = vpop.f32.mrf.mxu0
        %v346 = vadd.f32 0.0, %v345
        %v347 = vpop.f32.mrf.mxu0
        %348 = vmatprep.mubr.f32.mxu0 0.0
        %349 = vmatmul.mubr.f32.gmra.mxu0 %v264
        %v350 = vpop.f32.mrf.mxu0
        %v351 = vadd.f32 0.0, %v350
        %v352 = vpop.f32.mrf.mxu0
        %353 = vmatprep.mubr.f32.mxu0 0.0
        %354 = vmatmul.mubr.f32.gmra.mxu0 %v267
        %v355 = vpop.f32.mrf.mxu0
        %v356 = vadd.f32 0.0, %v355
        %v357 = vpop.f32.mrf.mxu0
        %358 = vdwg.mxu0
        %v359 = vld [vmem:[%s3] sm:$0x1]
        %v360 = vld [vmem:[%s2] sm:$0xff]
        %v361 = vld [vmem:[%s2 + $0x8] sm:$0xff]
        %v362 = vld [vmem:[%s2 + $0x10] sm:$0xff]
        %v363 = vld [vmem:[%s2 + $0x18] sm:$0xff]
        %vm364 = vcmask 261120
        %v366 = vsel %vm364, 0.0, 0
        %368 = vmatprep.subr.mxu0 0.0
        %369 = vmatpush1.msra.mxu0 0.0
        %370 = vmatprep.subr.mxu0 0.0
        %371 = vmatpush1.msra.mxu0 0.0
        %372 = vmatprep.subr.mxu0 0.0
        %373 = vmatpush1.msra.mxu0 0.0
        %374 = vmatprep.subr.mxu0 0.0
        %375 = vmatpush1.msra.mxu0 0.0
        %376 = vmatprep.subr.mxu0 0.0
        %377 = vmatpush1.msra.mxu0 0.0
        %378 = vmatprep.subr.mxu0 0.0
        %379 = vmatpush1.msra.mxu0 0.0
        %380 = vmatprep.subr.mxu0 0.0
        %381 = vmatpush1.msra.mxu0 0.0
        %382 = vmatprep.subr.mxu0 0.0
        %383 = vmatpush1.msra.mxu0 0.0
        %384 = vmatprep.subr.mxu0 0.0
        %385 = vmatpush1.msra.mxu0 0.0
        %386 = vmatprep.subr.mxu0 0.0
        %387 = vmatpush1.msra.mxu0 0.0
        %388 = vmatprep.subr.mxu0 0.0
        %389 = vmatpush1.msra.mxu0 0.0
        %390 = vmatprep.subr.mxu0 0.0
        %391 = vmatpush1.msra.mxu0 0.0
        %392 = vmatprep.subr.mxu0 0.0
        %393 = vmatpush1.msra.mxu0 %v363
        %394 = vmatprep.subr.mxu0 0.0
        %395 = vmatpush1.msra.mxu0 %v362
        %396 = vmatprep.subr.mxu0 0.0
        %397 = vmatpush1.msra.mxu0 %v361
        %398 = vmatprep.subr.mxu0 0.0
        %399 = vmatpush1.msra.mxu0 %v360
        %400 = vmatprep.subr.mxu0 0.0
        %401 = vmatpush2.msra.mxu0 0.0
        %402 = vmatprep.subr.mxu0 0.0
        %403 = vmatpush2.msra.mxu0 0.0
        %404 = vmatprep.subr.mxu0 0.0
        %405 = vmatpush2.msra.mxu0 0.0
        %406 = vmatprep.subr.mxu0 0.0
        %407 = vmatpush2.msra.mxu0 0.0
        %408 = vmatprep.subr.mxu0 0.0
        %409 = vmatpush2.msra.mxu0 0.0
        %410 = vmatprep.subr.mxu0 0.0
        %411 = vmatpush2.msra.mxu0 0.0
        %412 = vmatprep.subr.mxu0 0.0
        %413 = vmatpush2.msra.mxu0 0.0
        %414 = vmatprep.subr.mxu0 0.0
        %415 = vmatpush2.msra.mxu0 0.0
        %416 = vmatprep.subr.mxu0 0.0
        %417 = vmatpush2.msra.mxu0 0.0
        %418 = vmatprep.subr.mxu0 0.0
        %419 = vmatpush2.msra.mxu0 0.0
        %420 = vmatprep.subr.mxu0 0.0
        %421 = vmatpush2.msra.mxu0 0.0
        %422 = vmatprep.subr.mxu0 0.0
        %423 = vmatpush2.msra.mxu0 0.0
        %424 = vmatprep.subr.mxu0 0.0
        %425 = vmatpush2.msra.mxu0 0.0
        %426 = vmatprep.subr.mxu0 0.0
        %427 = vmatpush2.msra.mxu0 0.0
        %428 = vmatprep.subr.mxu0 0.0
        %429 = vmatpush2.msra.mxu0 0.0
        %430 = vmatprep.subr.mxu0 0.0
        %431 = vmatpush2.msra.mxu0 0.0
        %432 = vmatprep.mubr.f32.mxu0 0.0
        %433 = vmatmul.mubr.f32.gmra.mxu0 %v366
        %v434 = vpop.f32.mrf.mxu0
        %v435 = vadd.f32 0.0, %v434
        %v436 = vpop.f32.mrf.mxu0
        %437 = vdwg.mxu0
        %v438 = vadd.f32 %v336, %v435
        %v440 = vlaneseq
        %v441 = vshrl.u32 %v440, 7
        %v442 = vsub.s32 0, %v441
        %v443 = vrot.slane %v359, %v442
        %v445 = vadd.f32 %v438, %v443
        %v446 = vsub.f32 0.0, %v445
        %v447 = vmul.f32 %v446, 1.442695
        %v448 = vpow.pop %v447
        %v449 = vadd.f32 %v448, 1.0
        %v450 = vrcp.pop %v449
        %v451 = vmul.f32 1.0, %v450
        %v452 = vtanh.pop %v445
        %v453 = vmul.f32 %v451, 0.0
        %455 = vrot.lane.b32.xlu0 %v452, 64
        %v456 = vpop.permute.xlu0 %455
        %v458 = vmul.f32 %v451, %v456
        %460 = vrot.lane.b32.xlu0 %v458, 32
        %v461 = vpop.permute.xlu0 %460
        %v463 = vadd.f32 %v453, %v461
        %v464 = vtanh.pop %v463
        %466 = vrot.lane.b32.xlu0 %v464, 64
        %v467 = vpop.permute.xlu0 %466
        %v469 = vmul.f32 %v451, %v467
        %471 = vrot.lane.b32.xlu0 %v469, 32
        %v472 = vpop.permute.xlu0 %471
        %474 = vst.msk [vmem:[%s246] sm:$0xff] %vm364, %v472
        %v475 = vld [vmem:[%s2] sm:$0xff]
        %v476 = vld [vmem:[%s2 + $0x8] sm:$0xff]
        %v477 = vld [vmem:[%s2 + $0x10] sm:$0xff]
        %v478 = vld [vmem:[%s2 + $0x18] sm:$0xff]
        %v479 = vsel %vm364, %v472, 0
        %481 = vmatprep.subr.mxu0 0.0
        %482 = vmatpush1.msra.mxu0 0.0
        %483 = vmatprep.subr.mxu0 0.0
        %484 = vmatpush1.msra.mxu0 0.0
        %485 = vmatprep.subr.mxu0 0.0
        %486 = vmatpush1.msra.mxu0 0.0
        %487 = vmatprep.subr.mxu0 0.0
        %488 = vmatpush1.msra.mxu0 0.0
        %489 = vmatprep.subr.mxu0 0.0
        %490 = vmatpush1.msra.mxu0 0.0
        %491 = vmatprep.subr.mxu0 0.0
        %492 = vmatpush1.msra.mxu0 0.0
        %493 = vmatprep.subr.mxu0 0.0
        %494 = vmatpush1.msra.mxu0 0.0
        %495 = vmatprep.subr.mxu0 0.0
        %496 = vmatpush1.msra.mxu0 0.0
        %497 = vmatprep.subr.mxu0 0.0
        %498 = vmatpush1.msra.mxu0 0.0
        %499 = vmatprep.subr.mxu0 0.0
        %500 = vmatpush1.msra.mxu0 0.0
        %501 = vmatprep.subr.mxu0 0.0
        %502 = vmatpush1.msra.mxu0 0.0
        %503 = vmatprep.subr.mxu0 0.0
        %504 = vmatpush1.msra.mxu0 0.0
        %505 = vmatprep.subr.mxu0 0.0
        %506 = vmatpush1.msra.mxu0 %v478
        %507 = vmatprep.subr.mxu0 0.0
        %508 = vmatpush1.msra.mxu0 %v477
        %509 = vmatprep.subr.mxu0 0.0
        %510 = vmatpush1.msra.mxu0 %v476
        %511 = vmatprep.subr.mxu0 0.0
        %512 = vmatpush1.msra.mxu0 %v475
        %513 = vmatprep.subr.mxu0 0.0
        %514 = vmatpush2.msra.mxu0 0.0
        %515 = vmatprep.subr.mxu0 0.0
        %516 = vmatpush2.msra.mxu0 0.0
        %517 = vmatprep.subr.mxu0 0.0
        %518 = vmatpush2.msra.mxu0 0.0
        %519 = vmatprep.subr.mxu0 0.0
        %520 = vmatpush2.msra.mxu0 0.0
        %521 = vmatprep.subr.mxu0 0.0
        %522 = vmatpush2.msra.mxu0 0.0
        %523 = vmatprep.subr.mxu0 0.0
        %524 = vmatpush2.msra.mxu0 0.0
        %525 = vmatprep.subr.mxu0 0.0
        %526 = vmatpush2.msra.mxu0 0.0
        %527 = vmatprep.subr.mxu0 0.0
        %528 = vmatpush2.msra.mxu0 0.0
        %529 = vmatprep.subr.mxu0 0.0
        %530 = vmatpush2.msra.mxu0 0.0
        %531 = vmatprep.subr.mxu0 0.0
        %532 = vmatpush2.msra.mxu0 0.0
        %533 = vmatprep.subr.mxu0 0.0
        %534 = vmatpush2.msra.mxu0 0.0
        %535 = vmatprep.subr.mxu0 0.0
        %536 = vmatpush2.msra.mxu0 0.0
        %537 = vmatprep.subr.mxu0 0.0
        %538 = vmatpush2.msra.mxu0 0.0
        %539 = vmatprep.subr.mxu0 0.0
        %540 = vmatpush2.msra.mxu0 0.0
        %541 = vmatprep.subr.mxu0 0.0
        %542 = vmatpush2.msra.mxu0 0.0
        %543 = vmatprep.subr.mxu0 0.0
        %544 = vmatpush2.msra.mxu0 0.0
        %545 = vmatprep.mubr.f32.mxu0 0.0
        %546 = vmatmul.mubr.f32.gmra.mxu0 %v479
        %v547 = vpop.f32.mrf.mxu0
        %v548 = vadd.f32 0.0, %v547
        %v549 = vpop.f32.mrf.mxu0
        %550 = vdwg.mxu0
        %v551 = vadd.f32 %v341, %v548
        %v552 = vadd.f32 %v551, %v443
        %v553 = vsub.f32 0.0, %v552
        %v554 = vmul.f32 %v553, 1.442695
        %v555 = vpow.pop %v554
        %v556 = vadd.f32 %v555, 1.0
        %v557 = vrcp.pop %v556
        %v558 = vmul.f32 1.0, %v557
        %v559 = vtanh.pop %v552
        %v560 = vmul.f32 %v558, %v463
        %562 = vrot.lane.b32.xlu0 %v559, 64
        %v563 = vpop.permute.xlu0 %562
        %v565 = vmul.f32 %v558, %v563
        %567 = vrot.lane.b32.xlu0 %v565, 32
        %v568 = vpop.permute.xlu0 %567
        %v570 = vadd.f32 %v560, %v568
        %v571 = vtanh.pop %v570
        %573 = vrot.lane.b32.xlu0 %v571, 64
        %v574 = vpop.permute.xlu0 %573
        %v576 = vmul.f32 %v558, %v574
        %578 = vrot.lane.b32.xlu0 %v576, 32
        %v579 = vpop.permute.xlu0 %578
        %s581 = scalar_lea.vmem %s246, 8 [#allocation3]
        %582 = vst.msk [vmem:[%s581] sm:$0xff] %vm364, %v579
        %v583 = vld [vmem:[%s2] sm:$0xff]
        %v584 = vld [vmem:[%s2 + $0x8] sm:$0xff]
        %v585 = vld [vmem:[%s2 + $0x10] sm:$0xff]
        %v586 = vld [vmem:[%s2 + $0x18] sm:$0xff]
        %v587 = vsel %vm364, %v579, 0
        %589 = vmatprep.subr.mxu0 0.0
        %590 = vmatpush1.msra.mxu0 0.0
        %591 = vmatprep.subr.mxu0 0.0
        %592 = vmatpush1.msra.mxu0 0.0
        %593 = vmatprep.subr.mxu0 0.0
        %594 = vmatpush1.msra.mxu0 0.0
        %595 = vmatprep.subr.mxu0 0.0
        %596 = vmatpush1.msra.mxu0 0.0
        %597 = vmatprep.subr.mxu0 0.0
        %598 = vmatpush1.msra.mxu0 0.0
        %599 = vmatprep.subr.mxu0 0.0
        %600 = vmatpush1.msra.mxu0 0.0
        %601 = vmatprep.subr.mxu0 0.0
        %602 = vmatpush1.msra.mxu0 0.0
        %603 = vmatprep.subr.mxu0 0.0
        %604 = vmatpush1.msra.mxu0 0.0
        %605 = vmatprep.subr.mxu0 0.0
        %606 = vmatpush1.msra.mxu0 0.0
        %607 = vmatprep.subr.mxu0 0.0
        %608 = vmatpush1.msra.mxu0 0.0
        %609 = vmatprep.subr.mxu0 0.0
        %610 = vmatpush1.msra.mxu0 0.0
        %611 = vmatprep.subr.mxu0 0.0
        %612 = vmatpush1.msra.mxu0 0.0
        %613 = vmatprep.subr.mxu0 0.0
        %614 = vmatpush1.msra.mxu0 %v586
        %615 = vmatprep.subr.mxu0 0.0
        %616 = vmatpush1.msra.mxu0 %v585
        %617 = vmatprep.subr.mxu0 0.0
        %618 = vmatpush1.msra.mxu0 %v584
        %619 = vmatprep.subr.mxu0 0.0
        %620 = vmatpush1.msra.mxu0 %v583
        %621 = vmatprep.subr.mxu0 0.0
        %622 = vmatpush2.msra.mxu0 0.0
        %623 = vmatprep.subr.mxu0 0.0
        %624 = vmatpush2.msra.mxu0 0.0
        %625 = vmatprep.subr.mxu0 0.0
        %626 = vmatpush2.msra.mxu0 0.0
        %627 = vmatprep.subr.mxu0 0.0
        %628 = vmatpush2.msra.mxu0 0.0
        %629 = vmatprep.subr.mxu0 0.0
        %630 = vmatpush2.msra.mxu0 0.0
        %631 = vmatprep.subr.mxu0 0.0
        %632 = vmatpush2.msra.mxu0 0.0
        %633 = vmatprep.subr.mxu0 0.0
        %634 = vmatpush2.msra.mxu0 0.0
        %635 = vmatprep.subr.mxu0 0.0
        %636 = vmatpush2.msra.mxu0 0.0
        %637 = vmatprep.subr.mxu0 0.0
        %638 = vmatpush2.msra.mxu0 0.0
        %639 = vmatprep.subr.mxu0 0.0
        %640 = vmatpush2.msra.mxu0 0.0
        %641 = vmatprep.subr.mxu0 0.0
        %642 = vmatpush2.msra.mxu0 0.0
        %643 = vmatprep.subr.mxu0 0.0
        %644 = vmatpush2.msra.mxu0 0.0
        %645 = vmatprep.subr.mxu0 0.0
        %646 = vmatpush2.msra.mxu0 0.0
        %647 = vmatprep.subr.mxu0 0.0
        %648 = vmatpush2.msra.mxu0 0.0
        %649 = vmatprep.subr.mxu0 0.0
        %650 = vmatpush2.msra.mxu0 0.0
        %651 = vmatprep.subr.mxu0 0.0
        %652 = vmatpush2.msra.mxu0 0.0
        %653 = vmatprep.mubr.f32.mxu0 0.0
        %654 = vmatmul.mubr.f32.gmra.mxu0 %v587
        %v655 = vpop.f32.mrf.mxu0
        %v656 = vadd.f32 0.0, %v655
        %v657 = vpop.f32.mrf.mxu0
        %658 = vdwg.mxu0
        %v659 = vadd.f32 %v346, %v656
        %v660 = vadd.f32 %v659, %v443
        %v661 = vsub.f32 0.0, %v660
        %v662 = vmul.f32 %v661, 1.442695
        %v663 = vpow.pop %v662
        %v664 = vadd.f32 %v663, 1.0
        %v665 = vrcp.pop %v664
        %v666 = vmul.f32 1.0, %v665
        %v667 = vtanh.pop %v660
        %v668 = vmul.f32 %v666, %v570
        %670 = vrot.lane.b32.xlu0 %v667, 64
        %v671 = vpop.permute.xlu0 %670
        %v673 = vmul.f32 %v666, %v671
        %675 = vrot.lane.b32.xlu0 %v673, 32
        %v676 = vpop.permute.xlu0 %675
        %v678 = vadd.f32 %v668, %v676
        %v679 = vtanh.pop %v678
        %681 = vrot.lane.b32.xlu0 %v679, 64
        %v682 = vpop.permute.xlu0 %681
        %v684 = vmul.f32 %v666, %v682
        %686 = vrot.lane.b32.xlu0 %v684, 32
        %v687 = vpop.permute.xlu0 %686
        %s689 = scalar_lea.vmem %s246, 16 [#allocation3]
        %690 = vst.msk [vmem:[%s689] sm:$0xff] %vm364, %v687
        %v691 = vld [vmem:[%s2] sm:$0xff]
        %v692 = vld [vmem:[%s2 + $0x8] sm:$0xff]
        %v693 = vld [vmem:[%s2 + $0x10] sm:$0xff]
        %v694 = vld [vmem:[%s2 + $0x18] sm:$0xff]
        %v695 = vsel %vm364, %v687, 0
        %697 = vmatprep.subr.mxu0 0.0
        %698 = vmatpush1.msra.mxu0 0.0
        %699 = vmatprep.subr.mxu0 0.0
        %700 = vmatpush1.msra.mxu0 0.0
        %701 = vmatprep.subr.mxu0 0.0
        %702 = vmatpush1.msra.mxu0 0.0
        %703 = vmatprep.subr.mxu0 0.0
        %704 = vmatpush1.msra.mxu0 0.0
        %705 = vmatprep.subr.mxu0 0.0
        %706 = vmatpush1.msra.mxu0 0.0
        %707 = vmatprep.subr.mxu0 0.0
        %708 = vmatpush1.msra.mxu0 0.0
        %709 = vmatprep.subr.mxu0 0.0
        %710 = vmatpush1.msra.mxu0 0.0
        %711 = vmatprep.subr.mxu0 0.0
        %712 = vmatpush1.msra.mxu0 0.0
        %713 = vmatprep.subr.mxu0 0.0
        %714 = vmatpush1.msra.mxu0 0.0
        %715 = vmatprep.subr.mxu0 0.0
        %716 = vmatpush1.msra.mxu0 0.0
        %717 = vmatprep.subr.mxu0 0.0
        %718 = vmatpush1.msra.mxu0 0.0
        %719 = vmatprep.subr.mxu0 0.0
        %720 = vmatpush1.msra.mxu0 0.0
        %721 = vmatprep.subr.mxu0 0.0
        %722 = vmatpush1.msra.mxu0 %v694
        %723 = vmatprep.subr.mxu0 0.0
        %724 = vmatpush1.msra.mxu0 %v693
        %725 = vmatprep.subr.mxu0 0.0
        %726 = vmatpush1.msra.mxu0 %v692
        %727 = vmatprep.subr.mxu0 0.0
        %728 = vmatpush1.msra.mxu0 %v691
        %729 = vmatprep.subr.mxu0 0.0
        %730 = vmatpush2.msra.mxu0 0.0
        %731 = vmatprep.subr.mxu0 0.0
        %732 = vmatpush2.msra.mxu0 0.0
        %733 = vmatprep.subr.mxu0 0.0
        %734 = vmatpush2.msra.mxu0 0.0
        %735 = vmatprep.subr.mxu0 0.0
        %736 = vmatpush2.msra.mxu0 0.0
        %737 = vmatprep.subr.mxu0 0.0
        %738 = vmatpush2.msra.mxu0 0.0
        %739 = vmatprep.subr.mxu0 0.0
        %740 = vmatpush2.msra.mxu0 0.0
        %741 = vmatprep.subr.mxu0 0.0
        %742 = vmatpush2.msra.mxu0 0.0
        %743 = vmatprep.subr.mxu0 0.0
        %744 = vmatpush2.msra.mxu0 0.0
        %745 = vmatprep.subr.mxu0 0.0
        %746 = vmatpush2.msra.mxu0 0.0
        %747 = vmatprep.subr.mxu0 0.0
        %748 = vmatpush2.msra.mxu0 0.0
        %749 = vmatprep.subr.mxu0 0.0
        %750 = vmatpush2.msra.mxu0 0.0
        %751 = vmatprep.subr.mxu0 0.0
        %752 = vmatpush2.msra.mxu0 0.0
        %753 = vmatprep.subr.mxu0 0.0
        %754 = vmatpush2.msra.mxu0 0.0
        %755 = vmatprep.subr.mxu0 0.0
        %756 = vmatpush2.msra.mxu0 0.0
        %757 = vmatprep.subr.mxu0 0.0
        %758 = vmatpush2.msra.mxu0 0.0
        %759 = vmatprep.subr.mxu0 0.0
        %760 = vmatpush2.msra.mxu0 0.0
        %761 = vmatprep.mubr.f32.mxu0 0.0
        %762 = vmatmul.mubr.f32.gmra.mxu0 %v695
        %v763 = vpop.f32.mrf.mxu0
        %v764 = vadd.f32 0.0, %v763
        %v765 = vpop.f32.mrf.mxu0
        %766 = vdwg.mxu0
        %v767 = vadd.f32 %v351, %v764
        %v768 = vadd.f32 %v767, %v443
        %v769 = vsub.f32 0.0, %v768
        %v770 = vmul.f32 %v769, 1.442695
        %v771 = vpow.pop %v770
        %v772 = vadd.f32 %v771, 1.0
        %v773 = vrcp.pop %v772
        %v774 = vmul.f32 1.0, %v773
        %v775 = vtanh.pop %v768
        %v776 = vmul.f32 %v774, %v678
        %778 = vrot.lane.b32.xlu0 %v775, 64
        %v779 = vpop.permute.xlu0 %778
        %v781 = vmul.f32 %v774, %v779
        %783 = vrot.lane.b32.xlu0 %v781, 32
        %v784 = vpop.permute.xlu0 %783
        %v786 = vadd.f32 %v776, %v784
        %v787 = vtanh.pop %v786
        %789 = vrot.lane.b32.xlu0 %v787, 64
        %v790 = vpop.permute.xlu0 %789
        %v792 = vmul.f32 %v774, %v790
        %794 = vrot.lane.b32.xlu0 %v792, 32
        %v795 = vpop.permute.xlu0 %794
        %s797 = scalar_lea.vmem %s246, 24 [#allocation3]
        %798 = vst.msk [vmem:[%s797] sm:$0xff] %vm364, %v795
        %v799 = vld [vmem:[%s2] sm:$0xff]
        %v800 = vld [vmem:[%s2 + $0x8] sm:$0xff]
        %v801 = vld [vmem:[%s2 + $0x10] sm:$0xff]
        %v802 = vld [vmem:[%s2 + $0x18] sm:$0xff]
        %v803 = vsel %vm364, %v795, 0
        %805 = vmatprep.subr.mxu0 0.0
        %806 = vmatpush1.msra.mxu0 0.0
        %807 = vmatprep.subr.mxu0 0.0
        %808 = vmatpush1.msra.mxu0 0.0
        %809 = vmatprep.subr.mxu0 0.0
        %810 = vmatpush1.msra.mxu0 0.0
        %811 = vmatprep.subr.mxu0 0.0
        %812 = vmatpush1.msra.mxu0 0.0
        %813 = vmatprep.subr.mxu0 0.0
        %814 = vmatpush1.msra.mxu0 0.0
        %815 = vmatprep.subr.mxu0 0.0
        %816 = vmatpush1.msra.mxu0 0.0
        %817 = vmatprep.subr.mxu0 0.0
        %818 = vmatpush1.msra.mxu0 0.0
        %819 = vmatprep.subr.mxu0 0.0
        %820 = vmatpush1.msra.mxu0 0.0
        %821 = vmatprep.subr.mxu0 0.0
        %822 = vmatpush1.msra.mxu0 0.0
        %823 = vmatprep.subr.mxu0 0.0
        %824 = vmatpush1.msra.mxu0 0.0
        %825 = vmatprep.subr.mxu0 0.0
        %826 = vmatpush1.msra.mxu0 0.0
        %827 = vmatprep.subr.mxu0 0.0
        %828 = vmatpush1.msra.mxu0 0.0
        %829 = vmatprep.subr.mxu0 0.0
        %830 = vmatpush1.msra.mxu0 %v802
        %831 = vmatprep.subr.mxu0 0.0
        %832 = vmatpush1.msra.mxu0 %v801
        %833 = vmatprep.subr.mxu0 0.0
        %834 = vmatpush1.msra.mxu0 %v800
        %835 = vmatprep.subr.mxu0 0.0
        %836 = vmatpush1.msra.mxu0 %v799
        %837 = vmatprep.subr.mxu0 0.0
        %838 = vmatpush2.msra.mxu0 0.0
        %839 = vmatprep.subr.mxu0 0.0
        %840 = vmatpush2.msra.mxu0 0.0
        %841 = vmatprep.subr.mxu0 0.0
        %842 = vmatpush2.msra.mxu0 0.0
        %843 = vmatprep.subr.mxu0 0.0
        %844 = vmatpush2.msra.mxu0 0.0
        %845 = vmatprep.subr.mxu0 0.0
        %846 = vmatpush2.msra.mxu0 0.0
        %847 = vmatprep.subr.mxu0 0.0
        %848 = vmatpush2.msra.mxu0 0.0
        %849 = vmatprep.subr.mxu0 0.0
        %850 = vmatpush2.msra.mxu0 0.0
        %851 = vmatprep.subr.mxu0 0.0
        %852 = vmatpush2.msra.mxu0 0.0
        %853 = vmatprep.subr.mxu0 0.0
        %854 = vmatpush2.msra.mxu0 0.0
        %855 = vmatprep.subr.mxu0 0.0
        %856 = vmatpush2.msra.mxu0 0.0
        %857 = vmatprep.subr.mxu0 0.0
        %858 = vmatpush2.msra.mxu0 0.0
        %859 = vmatprep.subr.mxu0 0.0
        %860 = vmatpush2.msra.mxu0 0.0
        %861 = vmatprep.subr.mxu0 0.0
        %862 = vmatpush2.msra.mxu0 0.0
        %863 = vmatprep.subr.mxu0 0.0
        %864 = vmatpush2.msra.mxu0 0.0
        %865 = vmatprep.subr.mxu0 0.0
        %866 = vmatpush2.msra.mxu0 0.0
        %867 = vmatprep.subr.mxu0 0.0
        %868 = vmatpush2.msra.mxu0 0.0
        %869 = vmatprep.mubr.f32.mxu0 0.0
        %870 = vmatmul.mubr.f32.gmra.mxu0 %v803
        %v871 = vpop.f32.mrf.mxu0
        %v872 = vadd.f32 0.0, %v871
        %v873 = vpop.f32.mrf.mxu0
        %874 = vdwg.mxu0
        %v875 = vadd.f32 %v356, %v872
        %v876 = vadd.f32 %v875, %v443
        %v877 = vsub.f32 0.0, %v876
        %v878 = vmul.f32 %v877, 1.442695
        %v879 = vpow.pop %v878
        %v880 = vadd.f32 %v879, 1.0
        %v881 = vrcp.pop %v880
        %v882 = vmul.f32 1.0, %v881
        %v883 = vtanh.pop %v876
        %v884 = vmul.f32 %v882, %v786
        %886 = vrot.lane.b32.xlu0 %v883, 64
        %v887 = vpop.permute.xlu0 %886
        %v889 = vmul.f32 %v882, %v887
        %891 = vrot.lane.b32.xlu0 %v889, 32
        %v892 = vpop.permute.xlu0 %891
        %v894 = vadd.f32 %v884, %v892
        %v895 = vtanh.pop %v894
        %897 = vrot.lane.b32.xlu0 %v895, 64
        %v898 = vpop.permute.xlu0 %897
        %v900 = vmul.f32 %v882, %v898
        %902 = vrot.lane.b32.xlu0 %v900, 32
        %v903 = vpop.permute.xlu0 %902
        %s905 = scalar_lea.vmem %s246, 32 [#allocation3]
        %906 = vst.msk [vmem:[%s905] sm:$0xff] %vm364, %v903
        %s907 = sand.u32 %s115, 1
        %s908 = scalar_lea.sflag [#allocation4], %s907
        %s909 = sand.u32 %s115, 1
        %s910 = smul.addr %s909, 40
        %s911 = scalar_lea.vmem [#allocation3], %s910
        // Predicated region
        $region75: #{tpu_custom_call.1} parent=69 // pred_check
          %p912 = pneg %p125
        $region76: #{tpu_custom_call.1} parent=69 // pred_check_branch
          %914 = sbr.rel (%p912) target = $region78
        $region77: #{tpu_custom_call.1} parent=69 // pred_region
          %s916 = ssub.s32 640, 640
          %917 = vsyncadd %s908, %s916
          %s918 = smul.addr %s18, 128
          %s919 = scalar_lea.hbm %s4, %s918
          %s920 = sshll.u32 %s911, 4
          %s921 = int_to_ptr.vmem [resolvable:$true] %s920
          %926 = dma.vmem_to_hbm [thread:$0]  %s921, 640, %s919, %s908, 128, 256, 8
        $region78: #{tpu_custom_call.1} parent=69 // pred_fallthru
          _
      $region70: #{tpu_custom_call.1} parent=5 // pred_fallthru
        _
      %p927 = scmp.le.s32.totalorder 2, %s13
      // Predicated region
      $region79: #{tpu_custom_call.1} parent=5 // pred_check
        %p928 = pneg %p927
      $region80: #{tpu_custom_call.1} parent=5 // pred_check_branch
        %930 = sbr.rel (%p928) target = $region82
      $region81: #{tpu_custom_call.1} parent=5 // pred_region
        %s931 = ssub.s32 %s13, 2
        // Predicated region
        $region83: #{tpu_custom_call.1} parent=81 // pred_check
          %p932 = pneg %p131
        $region84: #{tpu_custom_call.1} parent=81 // pred_check_branch
          %934 = sbr.rel (%p932) target = $region86
        $region85: #{tpu_custom_call.1} parent=81 // pred_region
          %s935 = sand.u32 %s116, 1
          %s936 = scalar_lea.sflag [#allocation4], %s935
          %s937 = sand.u32 %s116, 1
          %s938 = smul.addr %s937, 40
          %s939 = scalar_lea.vmem [#allocation3], %s938
          %940 = dma.done %s936, 640
        $region86: #{tpu_custom_call.1} parent=81 // pred_fallthru
          _
      $region82: #{tpu_custom_call.1} parent=5 // pred_fallthru
        _
    $region6: #{tpu_custom_call.1} parent=1 // loop_footer
      %s17 = sadd.s32 1, %s13
    $region7: #{tpu_custom_call.1} parent=1 // loop_footer_branch
      %12 = sbr.rel target = $region3
    $region8: #{tpu_custom_call.1} parent=1 // loop_exit
      _
    %941 = vsyncpa [#allocation4], 1
    %s942 = scalar_lea.sflag [#allocation4], 1
    %943 = vsyncpa %s942, 1

</llo_original>
